<compile_context>
chip_gen: v7x
topology: tpu7x:2x2x1
jax: 0.10.0
libtpu: 0.0.40
codegen_flags: <defaults>
</compile_context>

<pallas_src>
import math
import functools

import jax
import jax.numpy as jnp
from jax.experimental import pallas as pl
from jax.experimental.pallas import tpu as pltpu

# ArcFace hyperparameters (from the module's __init__ defaults).
S = 30.0
M = 0.5
COS_M = math.cos(M)
SIN_M = math.sin(M)
TH = math.cos(math.pi - M)
MM = math.sin(math.pi - M) * M
EASY_MARGIN = False  # module hard-codes easy_margin = False


def _round_up(x, m):
    return ((x + m - 1) // m) * m


def arcface_kernel(cos_ref, tgt_ref, out_ref, *, s, cos_m, sin_m, th, mm,
                   tile_c, easy_margin, clamp_sine):
    cosine = cos_ref[...].astype(jnp.float32)              # [tb, tc]

    # Global class index of every lane in this tile (tile offset + iota).
    col0 = pl.program_id(1) * tile_c
    col_ids = col0 + jax.lax.broadcasted_iota(jnp.int32, cosine.shape, 1)
    mask = col_ids == tgt_ref[...]                          # [tb, tc]

    # Per-row target cosine via masked cross-lane reduce (XLU slot, free next
    # to the VPU/DMA work).  At most one lane per row matches; rows whose
    # target lies outside this class tile (and any masked boundary lanes)
    # reduce to 0 and the resulting phi is never selected.
    cos_t = jnp.sum(jnp.where(mask, cosine, 0.0), axis=-1, keepdims=True)

    # Exact PyTorch semantics: sqrt(1 - cos^2) with NO clamping (parity).
    # clamp_sine=True guards against |cosine| >= 1 from upstream rounding.
    sq = 1.0 - cos_t * cos_t
    if clamp_sine:
        sq = jnp.maximum(sq, 0.0)
    sine_t = jnp.sqrt(sq)
    phi_t = cos_t * cos_m - sine_t * sin_m                  # [tb, 1]
    if easy_margin:
        phi_t = jnp.where(cos_t > 0.0, phi_t, cos_t)
    else:
        phi_t = jnp.where(cos_t > th, phi_t, cos_t - mm)

    out_ref[...] = (jnp.where(mask, phi_t, cosine) * s).astype(out_ref.dtype)


def arcface_forward(cosine, target, *, tile_b=512, tile_c=2048,
                    clamp_sine=False, donate_cosine=False):
    """cosine: [B, C] f32/bf16, target: [B] int class indices -> [B, C]."""
    B, C = cosine.shape
    out_dtype = cosine.dtype
    itemsize = jnp.dtype(cosine.dtype).itemsize
    sublane = 16 if itemsize == 2 else 8

    # Tile sizes: full extent for small dims (always legal), otherwise a
    # lane-dense multiple of 128 on classes / sublane-aligned on rows.
    tb = B if B <= tile_b else _round_up(tile_b, sublane)
    tc = C if C <= tile_c else _round_up(tile_c, 128)

    tgt2d = target.astype(jnp.int32).reshape(B, 1)

    kernel = functools.partial(
        arcface_kernel,
        s=S, cos_m=COS_M, sin_m=SIN_M, th=TH, mm=MM,
        tile_c=tc, easy_margin=EASY_MARGIN, clamp_sine=clamp_sine)

    # Explicit VMEM budget: double-buffered input + output tiles (+ the tiny
    # target block) with headroom.  Raising it above v5e's 16 MiB scoped
    # default is safe on every generation (physical VMEM >= 64 MiB per TC).
    tile_bytes = tb * tc * (itemsize + jnp.dtype(out_dtype).itemsize) + tb * 4
    vmem_limit = max(int(2 * tile_bytes * 5 // 4) + (2 << 20), 32 << 20)

    aliases = {0: 0} if (donate_cosine and cosine.dtype == out_dtype) else {}

    return pl.pallas_call(
        kernel,
        out_shape=jax.ShapeDtypeStruct((B, C), out_dtype),
        grid_spec=pltpu.PrefetchScalarGridSpec(
            num_scalar_prefetch=0,
            # Class axis last/fastest: the (tb, 1) target block index is
            # unchanged across consecutive steps -> not re-fetched per tile.
            grid=(pl.cdiv(B, tb), pl.cdiv(C, tc)),
            in_specs=[
                pl.BlockSpec((tb, tc), lambda i, j: (i, j)),
                pl.BlockSpec((tb, 1), lambda i, j: (i, 0)),
            ],
            out_specs=pl.BlockSpec((tb, tc), lambda i, j: (i, j)),
        ),
        # Independent tiles -> both axes parallel (lets v7x's two TensorCores
        # split the HBM-bound loop; harmless no-op on v5e/v6e).
        compiler_params=pltpu.CompilerParams(
            dimension_semantics=("parallel", "parallel"),
            vmem_limit_bytes=vmem_limit),
        input_output_aliases=aliases,
    )(cosine, tgt2d)


def arcface_reference(cosine, target):
    """Pure-JAX reference reproducing the PyTorch forward."""
    cosine = cosine.astype(jnp.float32)
    sine = jnp.sqrt(1.0 - jnp.power(cosine, 2))
    phi = cosine * COS_M - sine * SIN_M
    phi = jnp.where(cosine > TH, phi, cosine - MM)
    one_hot = jax.nn.one_hot(target, cosine.shape[1], dtype=cosine.dtype)
    out = one_hot * phi + (1.0 - one_hot) * cosine
    return out * S


if __name__ == "__main__":
    key = jax.random.PRNGKey(0)
    k1, k2 = jax.random.split(key)

    # 1) Non-aligned class count + small forced tiles: exercises the 2D cdiv
    #    grid, the masked boundary class block, and per-tile column offsets.
    B, C = 16, 300
    cosine = jnp.clip(jax.random.normal(k1, (B, C), jnp.float32), -0.99, 0.99)
    target = jax.random.randint(k2, (B,), 0, C, dtype=jnp.int32)
    out = jax.block_until_ready(
        arcface_forward(cosine, target, tile_b=8, tile_c=128))
    ref = arcface_reference(cosine, target)
    assert out.shape == (B, C) and out.dtype == jnp.float32
    assert jnp.allclose(out, ref, atol=1e-5, rtol=1e-5), "mismatch (run 1)"

    # 2) Default (production) tiles; C straddles one class-tile boundary.
    B2, C2 = 32, 2500
    cosine2 = jnp.clip(jax.random.normal(k1, (B2, C2), jnp.float32), -0.99, 0.99)
    target2 = jax.random.randint(k2, (B2,), 0, C2, dtype=jnp.int32)
    out2 = jax.block_until_ready(arcface_forward(cosine2, target2))
    ref2 = arcface_reference(cosine2, target2)
    assert jnp.allclose(out2, ref2, atol=1e-5, rtol=1e-5), "mismatch (run 2)"

    # 3) bf16 cosine accepted directly (cast to f32 on the VMEM tile, bf16 out)
    #    -> halves HBM traffic for this bandwidth-bound epilogue.
    cos_bf = cosine[:, :256].astype(jnp.bfloat16)
    tgt_bf = jnp.minimum(target, 255)
    out3 = jax.block_until_ready(arcface_forward(cos_bf, tgt_bf))
    ref3 = arcface_reference(cos_bf, tgt_bf)
    assert out3.dtype == jnp.bfloat16
    assert jnp.allclose(out3.astype(jnp.float32), ref3, atol=0.25, rtol=0.05), \
        "mismatch (run 3, bf16)"

    print("KERNEL_OK")
</pallas_src>

<mosaic_0001>
module attributes {stable_mosaic.version = 11 : i64} {
  func.func @arcface_kernel(%arg0: i32, %arg1: i32, %arg2: memref<8x128xf32, #tpu.memory_space<vmem>>, %arg3: memref<8x1xi32, #tpu.memory_space<vmem>>, %arg4: memref<8x128xf32, #tpu.memory_space<vmem>>) attributes {dimension_semantics = [#tpu.dimension_semantics<parallel>, #tpu.dimension_semantics<parallel>], iteration_bounds = array<i64: 2, 3>, scalar_prefetch = 0 : i64, scratch_operands = 0 : i64, tpu.core_type = #tpu.core_type<tc>, window_params = [{transform_indices = @transform_0, window_bounds = array<i64: 8, 128>}, {transform_indices = @transform_1, window_bounds = array<i64: 8, 1>}, {transform_indices = @transform_2, window_bounds = array<i64: 8, 128>}]} {
    %c0 = arith.constant 0 : index
    %c0_0 = arith.constant 0 : index
    %0 = vector.load %arg2[%c0, %c0_0] : memref<8x128xf32, #tpu.memory_space<vmem>>, vector<8x128xf32>
    %c128_i32 = arith.constant 128 : i32
    %1 = arith.muli %arg1, %c128_i32 : i32
    %2 = tpu.iota {dimensions = array<i32: 1>} : vector<8x128xi32>
    %3 = vector.broadcast %1 : i32 to vector<8x128xi32>
    %4 = arith.addi %3, %2 : vector<8x128xi32>
    %c0_1 = arith.constant 0 : index
    %c0_2 = arith.constant 0 : index
    %5 = vector.load %arg3[%c0_1, %c0_2] : memref<8x1xi32, #tpu.memory_space<vmem>>, vector<8x1xi32>
    %6 = vector.broadcast %5 : vector<8x1xi32> to vector<8x128xi32>
    %7 = arith.cmpi eq, %4, %6 : vector<8x128xi32>
    %cst = arith.constant 0.000000e+00 : f32
    %8 = vector.broadcast %cst : f32 to vector<8x128xf32>
    %9 = arith.select %7, %0, %8 : vector<8x128xi1>, vector<8x128xf32>
    %cst_3 = arith.constant dense<0.000000e+00> : vector<8xf32>
    %10 = vector.multi_reduction <add>, %9, %cst_3 [1] : vector<8x128xf32> to vector<8xf32>
    %11 = vector.shape_cast %10 : vector<8xf32> to vector<8x1xf32>
    %12 = arith.mulf %11, %11 : vector<8x1xf32>
    %cst_4 = arith.constant 1.000000e+00 : f32
    %13 = vector.broadcast %cst_4 : f32 to vector<8x1xf32>
    %14 = arith.subf %13, %12 : vector<8x1xf32>
    %15 = math.sqrt %14 : vector<8x1xf32>
    %cst_5 = arith.constant 0.87758255 : f32
    %16 = vector.broadcast %cst_5 : f32 to vector<8x1xf32>
    %17 = arith.mulf %11, %16 : vector<8x1xf32>
    %cst_6 = arith.constant 0.47942555 : f32
    %18 = vector.broadcast %cst_6 : f32 to vector<8x1xf32>
    %19 = arith.mulf %15, %18 : vector<8x1xf32>
    %20 = arith.subf %17, %19 : vector<8x1xf32>
    %cst_7 = arith.constant -0.87758255 : f32
    %21 = vector.broadcast %cst_7 : f32 to vector<8x1xf32>
    %22 = arith.cmpf ogt, %11, %21 : vector<8x1xf32>
    %cst_8 = arith.constant 0.239712775 : f32
    %23 = vector.broadcast %cst_8 : f32 to vector<8x1xf32>
    %24 = arith.subf %11, %23 : vector<8x1xf32>
    %25 = arith.select %22, %20, %24 : vector<8x1xi1>, vector<8x1xf32>
    %26 = vector.shape_cast %25 : vector<8x1xf32> to vector<8x1xf32>
    %27 = vector.broadcast %26 : vector<8x1xf32> to vector<8x128xf32>
    %28 = arith.select %7, %27, %0 : vector<8x128xi1>, vector<8x128xf32>
    %cst_9 = arith.constant 3.000000e+01 : f32
    %29 = vector.broadcast %cst_9 : f32 to vector<8x128xf32>
    %30 = arith.mulf %28, %29 : vector<8x128xf32>
    %c0_10 = arith.constant 0 : index
    %c0_11 = arith.constant 0 : index
    %31 = vector.load %arg4[%c0_10, %c0_11] : memref<8x128xf32, #tpu.memory_space<vmem>>, vector<8x128xf32>
    tpu.vector_store %arg4[%c0_10, %c0_11], %30 {strides = array<i32>} : memref<8x128xf32, #tpu.memory_space<vmem>>, vector<8x128xf32>,
    return
  }
  func.func @transform_0(%arg0: i32, %arg1: i32) -> (i32, i32) {
    %c0_i32 = arith.constant 0 : i32
    return %arg0, %arg1 : i32, i32
  }
  func.func @transform_1(%arg0: i32, %arg1: i32) -> (i32, i32) {
    %c0_i32 = arith.constant 0 : i32
    %c0_i32_0 = arith.constant 0 : i32
    return %arg0, %c0_i32 : i32, i32
  }
  func.func @transform_2(%arg0: i32, %arg1: i32) -> (i32, i32) {
    %c0_i32 = arith.constant 0 : i32
    return %arg0, %arg1 : i32, i32
  }
}

</mosaic_0001>

<llo_original>
// kernel: tpu_custom_call.1
$region0: #{tpu_custom_call.1}
  #allocation0 [shape = 'u32[]', space=smem, size = 0x4, offset = 0x4, fixed_abs, tag = 'smem constant byte address 0x4 - core index']
  #allocation1 [shape = 'u32[144,128]{1,0:T(1,128)}', space=vmem, size = 0x12000, scoped, tag = 'internal scratch']
  %s0 = inlined_call_operand.hbm [shape: f32[16,300], index: 0, kind: input, shape index: {}]
  %s1 = inlined_call_operand.vmem [shape: s32[16,1], index: 1, kind: input, shape index: {}]
  %s2 = inlined_call_operand.hbm [shape: f32[16,300], index: 2, kind: output, shape index: {}]
  %s3 = sld [smem:[#allocation0]]
  $region45: #{tpu_custom_call.1} parent=0
    _
  %s5 = ssub.s32 1, %s3
  %s6 = scalar_select 0, %s5, %s3
  $region1: #{tpu_custom_call.1} parent=0
    #allocation2 [shape = 'u8[8192]{0}', space=vmem, size = 0x2000, scoped, tag = 'input window, operand 0']
    #allocation3 [shape = 's32[2]{0}', space=sflag, size = 0x8, scoped, tag = 'scoped memory for tpu_custom_call.1']
    #allocation4 [shape = 's32[2]{0}', space=sflag, size = 0x8, scoped, tag = 'scoped memory for tpu_custom_call.1']
    #allocation5 [shape = 'u8[8192]{0}', space=vmem, size = 0x2000, scoped, tag = 'output window, operand 0']
    %7 = vsyncpa [#allocation3], 0
    %s8 = scalar_lea.sflag [#allocation3], 1
    %9 = vsyncpa %s8, 0
    %10 = vsyncpa [#allocation4], 0
    %s11 = scalar_lea.sflag [#allocation4], 1
    %12 = vsyncpa %s11, 0
    loop: start=0, step=1, limit=8
    $region2: #{tpu_custom_call.1} parent=1 // loop_pre_header
      _
    $region3: #{tpu_custom_call.1} parent=1 // loop_header
      %s14 = sphi 0, %s18
      %p15 = scmp.ge.s32.totalorder %s14, 8
      %s21 = sphi 0, %s33
      %s22 = sphi 0, %s29
      %s23 = sphi 0, %s21
      %s24 = sphi 0, %s22
      %s25 = sphi 0, %s23
      %s26 = sphi 0, %s24
      %s38 = sphi 0, %s40
      %s41 = sphi 0, %s38
      %s42 = sphi 0, %s41
      %s58 = sphi 0, %s42
      %s64 = sphi 0, %s66
      %s67 = sphi 0, %s64
      %s68 = sphi 0, %s67
      %s84 = sphi 0, %s68
      %s92 = sphi 0, %s94
      %s95 = sphi 0, %s92
      %s96 = sphi 0, %s95
      %s112 = sphi 0, %s96
    $region4: #{tpu_custom_call.1} parent=1 // loop_header_branch
      %17 = sbr.rel (%p15) target = $region8
    $region5: #{tpu_custom_call.1} parent=1 // loop_body
      %s19 = ssub.s32 %s14, 1
      %s20 = ssub.s32 %s14, 2
      %s27 = sadd.s32 1, %s22
      %p28 = scmp.ge.s32.totalorder %s27, 3
      %s29 = scalar_select %p28, 0, %s27
      %s30 = sadd.s32 1, %s21
      %s31 = scalar_select %p28, %s30, %s21
      %p32 = scmp.ge.s32.totalorder %s31, 2
      %s33 = scalar_select %p32, 0, %s31
      %s34 = ssub.s32 %s21, %s33
      %s35 = ssub.s32 %s22, %s29
      %s36 = sor.u32 %s34, %s35
      %p37 = scmp.eq.s32.totalorder %s36, 0
      %s39 = sadd.s32 %s38, 1
      %s40 = scalar_select %p37, %s38, %s39
      %p43 = pneg %p37
      %p44 = scmp.eq.s32.totalorder %s14, 5
      %p45 = por %p43, %p44
      %p46 = scmp.ne.s32.totalorder %s38, %s41
      %p47 = scmp.eq.s32.totalorder %s14, 0
      %p48 = por %p46, %p47
      %p49 = scmp.ne.s32.totalorder %s38, %s41
      %p50 = scmp.eq.s32.totalorder %s19, 5
      %p51 = por %p49, %p50
      %p52 = scmp.ne.s32.totalorder %s41, %s42
      %p53 = scmp.eq.s32.totalorder %s19, 0
      %p54 = por %p52, %p53
      %p55 = scmp.ne.s32.totalorder %s41, %s42
      %p56 = scmp.eq.s32.totalorder %s20, 5
      %p57 = por %p55, %p56
      %p59 = scmp.ne.s32.totalorder %s42, %s58
      %p60 = scmp.eq.s32.totalorder %s20, 0
      %p61 = por %p59, %p60
      %s62 = ssub.s32 %s21, %s33
      %p63 = scmp.eq.s32.totalorder %s62, 0
      %s65 = sadd.s32 %s64, 1
      %s66 = scalar_select %p63, %s64, %s65
      %p69 = pneg %p63
      %p70 = scmp.eq.s32.totalorder %s14, 5
      %p71 = por %p69, %p70
      %p72 = scmp.ne.s32.totalorder %s64, %s67
      %p73 = scmp.eq.s32.totalorder %s14, 0
      %p74 = por %p72, %p73
      %p75 = scmp.ne.s32.totalorder %s64, %s67
      %p76 = scmp.eq.s32.totalorder %s19, 5
      %p77 = por %p75, %p76
      %p78 = scmp.ne.s32.totalorder %s67, %s68
      %p79 = scmp.eq.s32.totalorder %s19, 0
      %p80 = por %p78, %p79
      %p81 = scmp.ne.s32.totalorder %s67, %s68
      %p82 = scmp.eq.s32.totalorder %s20, 5
      %p83 = por %p81, %p82
      %p85 = scmp.ne.s32.totalorder %s68, %s84
      %p86 = scmp.eq.s32.totalorder %s20, 0
      %p87 = por %p85, %p86
      %s88 = ssub.s32 %s21, %s33
      %s89 = ssub.s32 %s22, %s29
      %s90 = sor.u32 %s88, %s89
      %p91 = scmp.eq.s32.totalorder %s90, 0
      %s93 = sadd.s32 %s92, 1
      %s94 = scalar_select %p91, %s92, %s93
      %p97 = pneg %p91
      %p98 = scmp.eq.s32.totalorder %s14, 5
      %p99 = por %p97, %p98
      %p100 = scmp.ne.s32.totalorder %s92, %s95
      %p101 = scmp.eq.s32.totalorder %s14, 0
      %p102 = por %p100, %p101
      %p103 = scmp.ne.s32.totalorder %s92, %s95
      %p104 = scmp.eq.s32.totalorder %s19, 5
      %p105 = por %p103, %p104
      %p106 = scmp.ne.s32.totalorder %s95, %s96
      %p107 = scmp.eq.s32.totalorder %s19, 0
      %p108 = por %p106, %p107
      %p109 = scmp.ne.s32.totalorder %s95, %s96
      %p110 = scmp.eq.s32.totalorder %s20, 5
      %p111 = por %p109, %p110
      %p113 = scmp.ne.s32.totalorder %s96, %s112
      %p114 = scmp.eq.s32.totalorder %s20, 0
      %p115 = por %p113, %p114
      %p116 = scmp.le.s32.totalorder 1, %s14
      %p117 = scmp.lt.s32.totalorder %s14, 7
      %p118 = pnand %p116, %p117
      %p119 = pneg %p118
      // Predicated region
      $region9: #{tpu_custom_call.1} parent=5 // pred_check
        _
      $region10: #{tpu_custom_call.1} parent=5 // pred_check_branch
        %121 = sbr.rel (%p118) target = $region12
      $region11: #{tpu_custom_call.1} parent=5 // pred_region
        %s122 = ssub.s32 %s14, 1
      $region12: #{tpu_custom_call.1} parent=5 // pred_fallthru
        _
      %p123 = scmp.lt.s32.totalorder %s14, 6
      // Predicated region
      $region13: #{tpu_custom_call.1} parent=5 // pred_check
        %p124 = pneg %p123
      $region14: #{tpu_custom_call.1} parent=5 // pred_check_branch
        %126 = sbr.rel (%p124) target = $region16
      $region15: #{tpu_custom_call.1} parent=5 // pred_region
        // Predicated region
        $region17: #{tpu_custom_call.1} parent=15 // pred_check
          %p127 = pneg %p48
        $region18: #{tpu_custom_call.1} parent=15 // pred_check_branch
          %129 = sbr.rel (%p127) target = $region20
        $region19: #{tpu_custom_call.1} parent=15 // pred_region
          %s130 = sand.u32 %s38, 1
          %s131 = scalar_lea.sflag [#allocation3], %s130
          %s132 = sand.u32 %s38, 1
          %s133 = smul.addr %s132, 8
          %s134 = scalar_lea.vmem [#allocation2], %s133
          %s136 = ssub.s32 128, 128
          %137 = vsyncadd %s131, %s136
          %s138 = smul.addr %s21, 3
          %s139 = sadd.s32 %s22, %s138
          %s140 = smul.addr %s139, 128
          %s141 = scalar_lea.hbm %s0, %s140
          %s143 = sshll.u32 %s134, 4
          %s144 = int_to_ptr.vmem [resolvable:$true] %s143
          %146 = dma.hbm_to_vmem [thread:$0]  %s141, 128, %s144, %s131
        $region20: #{tpu_custom_call.1} parent=15 // pred_fallthru
          _
        // Predicated region
        $region21: #{tpu_custom_call.1} parent=15 // pred_check
          %p147 = pneg %p74
        $region22: #{tpu_custom_call.1} parent=15 // pred_check_branch
          %149 = sbr.rel (%p147) target = $region24
        $region23: #{tpu_custom_call.1} parent=15 // pred_region
          %p150 = scmp.lt.s32.totalorder %s21, 1
          %s151 = scalar_select %p150, %s21, 1
          %s152 = smul.addr %s151, 8
          %s153 = scalar_lea.vmem %s1, %s152
        $region24: #{tpu_custom_call.1} parent=15 // pred_fallthru
          _
      $region16: #{tpu_custom_call.1} parent=5 // pred_fallthru
        _
      %p154 = scmp.le.s32.totalorder 1, %s14
      %p155 = scmp.lt.s32.totalorder %s14, 7
      %p156 = pnand %p154, %p155
      %p157 = pneg %p156
      // Predicated region
      $region25: #{tpu_custom_call.1} parent=5 // pred_check
        _
      $region26: #{tpu_custom_call.1} parent=5 // pred_check_branch
        %159 = sbr.rel (%p156) target = $region28
      $region27: #{tpu_custom_call.1} parent=5 // pred_region
        %s160 = ssub.s32 %s14, 1
        %s161 = sand.u32 %s41, 1
        %s162 = scalar_lea.sflag [#allocation3], %s161
        %s163 = sand.u32 %s41, 1
        %s164 = smul.addr %s163, 8
        %s165 = scalar_lea.vmem [#allocation2], %s164
        // Predicated region
        $region29: #{tpu_custom_call.1} parent=27 // pred_check
          %p166 = pneg %p54
        $region30: #{tpu_custom_call.1} parent=27 // pred_check_branch
          %168 = sbr.rel (%p166) target = $region32
        $region31: #{tpu_custom_call.1} parent=27 // pred_region
          %169 = dma.done %s162, 128
        $region32: #{tpu_custom_call.1} parent=27 // pred_fallthru
          _
        %s170 = sand.u32 %s41, 1
        %s171 = scalar_lea.sflag [#allocation3], %s170
        %s172 = sand.u32 %s41, 1
        %s173 = smul.addr %s172, 8
        %s174 = scalar_lea.vmem [#allocation2], %s173
        %p175 = pneg %p54
        %p176 = pneg %p51
        %p177 = scmp.lt.s32.totalorder %s23, 1
        %s178 = scalar_select %p177, %s23, 1
        %s179 = smul.addr %s178, 8
        %s180 = scalar_lea.vmem %s1, %s179
        %p181 = pneg %p80
        %p182 = pneg %p77
        %p183 = pneg %p108
        %p184 = pneg %p105
        %s185 = sand.u32 %s95, 1
        %s186 = scalar_lea.sflag [#allocation4], %s185
        %s187 = sand.u32 %s95, 1
        %s188 = smul.addr %s187, 8
        %s189 = scalar_lea.vmem [#allocation5], %s188
        %p190 = scmp.lt.s32.totalorder %s23, 1
        %s191 = scalar_select %p190, %s23, 1
        %s192 = smul.addr %s191, 8
        %s193 = scalar_lea.vmem %s1, %s192
        %v194 = vld [vmem:[%s165] sm:$0xff]
        %s195 = smul.u32 %s24, 128
        %v196 = vlaneseq
        %v197 = vand.u32 %v196, 127
        %v198 = vstv %s195
        %v199 = vadd.s32 %v198, %v197
        %v200 = vld [vmem:[%s193] sm:$0xff]
        %201 = vset.pattern.permute.xlu0 0
        %202 = vperm.xlu0 %201, %v200
        %v203 = vpop.permute.xlu0 %202
        %vm204 = vcmp.eq.s32.totalorder %v199, %v203
        %v205 = vsel %vm204, %v194, 0.0
        %206 = vadd.xlane.f32.xlu0 %v205
        %v207 = vpop.xlane.xlu0 %206
        %v208 = vmul.f32 %v207, %v207
        %v209 = vsub.f32 1.0, %v208
        %v210 = vrsqrt.pop %v209
        %v211 = vmul.f32 %v209, %v210
        %vm212 = vcmp.eq.f32.partialorder %v209, inf
        %v213 = vsel %vm212, %v209, %v211
        %vm214 = vcmp.eq.f32.partialorder %v209, 0.0
        %v215 = vand.u32 %v209, 2147483648
        %v216 = vsel %vm214, %v215, %v213
        %v217 = vmul.f32 %v207, 0.87758255
        %v218 = vmul.f32 %v216, 0.47942555
        %v219 = vsub.f32 %v217, %v218
        %vm220 = vcmp.gt.f32.partialorder %v207, -0.87758255
        %v221 = vsub.f32 %v207, 0.23971277
        %v222 = vsel %vm220, %v219, %v221
        %v223 = vsel %vm204, %v222, %v194
        %v224 = vmul.f32 %v223, 30.0
        %225 = vst [vmem:[%s189] sm:$0xff] %v224
        %s226 = sand.u32 %s95, 1
        %s227 = scalar_lea.sflag [#allocation4], %s226
        %s228 = sand.u32 %s95, 1
        %s229 = smul.addr %s228, 8
        %s230 = scalar_lea.vmem [#allocation5], %s229
        // Predicated region
        $region33: #{tpu_custom_call.1} parent=27 // pred_check
          %p231 = pneg %p105
        $region34: #{tpu_custom_call.1} parent=27 // pred_check_branch
          %233 = sbr.rel (%p231) target = $region36
        $region35: #{tpu_custom_call.1} parent=27 // pred_region
          %s235 = ssub.s32 128, 128
          %236 = vsyncadd %s227, %s235
          %s237 = smul.addr %s23, 3
          %s238 = sadd.s32 %s24, %s237
          %s239 = smul.addr %s238, 128
          %s240 = scalar_lea.hbm %s2, %s239
          %s242 = sshll.u32 %s230, 4
          %s243 = int_to_ptr.vmem [resolvable:$true] %s242
          %245 = dma.vmem_to_hbm [thread:$0]  %s243, 128, %s240, %s227
        $region36: #{tpu_custom_call.1} parent=27 // pred_fallthru
          _
      $region28: #{tpu_custom_call.1} parent=5 // pred_fallthru
        _
      %p246 = scmp.le.s32.totalorder 2, %s14
      // Predicated region
      $region37: #{tpu_custom_call.1} parent=5 // pred_check
        %p247 = pneg %p246
      $region38: #{tpu_custom_call.1} parent=5 // pred_check_branch
        %249 = sbr.rel (%p247) target = $region40
      $region39: #{tpu_custom_call.1} parent=5 // pred_region
        %s250 = ssub.s32 %s14, 2
        // Predicated region
        $region41: #{tpu_custom_call.1} parent=39 // pred_check
          %p251 = pneg %p111
        $region42: #{tpu_custom_call.1} parent=39 // pred_check_branch
          %253 = sbr.rel (%p251) target = $region44
        $region43: #{tpu_custom_call.1} parent=39 // pred_region
          %s254 = sand.u32 %s96, 1
          %s255 = scalar_lea.sflag [#allocation4], %s254
          %s256 = sand.u32 %s96, 1
          %s257 = smul.addr %s256, 8
          %s258 = scalar_lea.vmem [#allocation5], %s257
          %259 = dma.done %s255, 128
        $region44: #{tpu_custom_call.1} parent=39 // pred_fallthru
          _
      $region40: #{tpu_custom_call.1} parent=5 // pred_fallthru
        _
    $region6: #{tpu_custom_call.1} parent=1 // loop_footer
      %s18 = sadd.s32 1, %s14
    $region7: #{tpu_custom_call.1} parent=1 // loop_footer_branch
      %13 = sbr.rel target = $region3
    $region8: #{tpu_custom_call.1} parent=1 // loop_exit
      _
    %260 = vsyncpa [#allocation3], 1
    %s261 = scalar_lea.sflag [#allocation3], 1
    %262 = vsyncpa %s261, 1
    %263 = vsyncpa [#allocation4], 1
    %s264 = scalar_lea.sflag [#allocation4], 1
    %265 = vsyncpa %s264, 1

</llo_original>
